<compile_context>
chip_gen: v7x
topology: tpu7x:2x2x1
jax: 0.10.0
libtpu: 0.0.40
codegen_flags: <defaults>
</compile_context>

<pallas_src>
import functools
import math
from dataclasses import dataclass

import jax
import jax.numpy as jnp
from jax import lax
from jax.experimental import pallas as pl
from jax.experimental.pallas import tpu as pltpu


# ----------------------------- config ---------------------------------------
@dataclass
class GPTConfig:
    block_size: int = 64
    vocab_size: int = 256
    n_layer: int = 2
    n_head: int = 4
    n_embd: int = 64
    intermediate_size: int = 128
    n_kv_heads: int = 2
    hidden_act: str = "silu"
    rms_norm_eps: float = 1e-5
    rope_theta: float = 10000.0


# ----------------------------- tiling helpers --------------------------------
_TM_PREF = 256    # row tiles
_TN_PREF = 256    # output-column tiles
_TK_PREF = 512    # contraction tiles
_TI_PREF = 512    # MLP intermediate tiles
_TQ_PREF = 128    # attention q tile
_TKV_PREF = 128   # attention kv tile


def _pick_tile(dim, preferred, aligns=(8,)):
    """Largest divisor of `dim` that is a multiple of one of `aligns`
    (tried in order) and <= preferred.  Falls back to the full dim."""
    for align in aligns:
        if dim % align != 0:
            continue
        t = min(preferred, dim)
        t -= t % align
        while t > 0 and dim % t != 0:
            t -= align
        if t > 0:
            return t
    return dim


def _mlp_inter_tile(intermediate):
    return _pick_tile(intermediate, _TI_PREF, (256, 128))


def _compiler_params(dim_sem, vmem_bytes=None):
    kwargs = {}
    if vmem_bytes is not None and vmem_bytes > (32 << 20):
        # raise the scoped VMEM limit only when the block set needs it; cap at
        # 56 MiB so the same value is safe on v7x (64 MiB physical per TC).
        kwargs["vmem_limit_bytes"] = int(min(vmem_bytes, 56 << 20))
    return pltpu.CompilerParams(dimension_semantics=dim_sem, **kwargs)


# --------------- fused RMSNorm + matmul (xn cached across j) ------------------
def _rms_matmul_kernel(x_ref, ln_ref, w_ref, o_ref, xn_ref, *, eps):
    @pl.when(pl.program_id(1) == 0)
    def _():
        x = x_ref[...].astype(jnp.float32)
        ms = jnp.mean(x * x, axis=-1, keepdims=True)
        xn_ref[...] = (x * lax.rsqrt(ms + eps) * ln_ref[...]).astype(jnp.bfloat16)

    o_ref[...] = jnp.dot(xn_ref[...], w_ref[...].astype(jnp.bfloat16),
                         preferred_element_type=jnp.float32).astype(o_ref.dtype)


def pallas_rms_matmul(x, ln_w, w, eps, out_dtype=jnp.bfloat16):
    M, D = x.shape
    D2, N = w.shape
    assert D == D2
    tm = _pick_tile(M, _TM_PREF, (8,))
    tn = _pick_tile(N, _TN_PREF, (256, 128))
    grid = (M // tm, N // tn)
    ln2d = ln_w.reshape(1, D).astype(jnp.float32)
    out_isz = jnp.dtype(out_dtype).itemsize
    cost = pl.CostEstimate(
        flops=2 * M * N * D + 4 * M * D, transcendentals=M,
        bytes_accessed=(x.size * x.dtype.itemsize + w.size * w.dtype.itemsize
                        + M * N * out_isz))
    vmem = (2 * (tm * D * x.dtype.itemsize + D * tn * w.dtype.itemsize
                 + tm * tn * out_isz) + tm * D * 2 + (2 << 20))
    return pl.pallas_call(
        functools.partial(_rms_matmul_kernel, eps=eps),
        out_shape=jax.ShapeDtypeStruct((M, N), out_dtype),
        grid_spec=pltpu.PrefetchScalarGridSpec(
            num_scalar_prefetch=0,
            grid=grid,
            in_specs=[pl.BlockSpec((tm, D), lambda i, j: (i, 0)),
                      pl.BlockSpec((1, D), lambda i, j: (0, 0)),
                      pl.BlockSpec((D, tn), lambda i, j: (0, j))],
            out_specs=pl.BlockSpec((tm, tn), lambda i, j: (i, j)),
            scratch_shapes=[pltpu.VMEM((tm, D), jnp.bfloat16)]),
        compiler_params=_compiler_params(("parallel", "arbitrary"), vmem),
        cost_estimate=cost,
    )(x, ln2d, w)


# --------------------- matmul with fused residual add ------------------------
def _matmul_residual_kernel(a_ref, b_ref, r_ref, o_ref, acc_ref):
    @pl.when(pl.program_id(2) == 0)
    def _():
        acc_ref[...] = jnp.zeros_like(acc_ref)

    acc_ref[...] += jnp.dot(a_ref[...].astype(jnp.bfloat16),
                            b_ref[...].astype(jnp.bfloat16),
                            preferred_element_type=jnp.float32)

    @pl.when(pl.program_id(2) == pl.num_programs(2) - 1)
    def _():
        o_ref[...] = (acc_ref[...]
                      + r_ref[...].astype(jnp.float32)).astype(o_ref.dtype)


def pallas_matmul_residual(a, b, res, out_dtype=jnp.bfloat16):
    M, K = a.shape
    K2, N = b.shape
    assert K == K2 and res.shape == (M, N)
    tm = _pick_tile(M, _TM_PREF, (8,))
    tn = _pick_tile(N, _TN_PREF, (256, 128))
    tk = _pick_tile(K, _TK_PREF, (256, 128))
    grid = (M // tm, N // tn, K // tk)
    out_isz = jnp.dtype(out_dtype).itemsize
    cost = pl.CostEstimate(
        flops=2 * M * N * K + M * N, transcendentals=0,
        bytes_accessed=(a.size * a.dtype.itemsize + b.size * b.dtype.itemsize
                        + res.size * res.dtype.itemsize + M * N * out_isz))
    vmem = (2 * (tm * tk * a.dtype.itemsize + tk * tn * b.dtype.itemsize
                 + tm * tn * res.dtype.itemsize + tm * tn * out_isz)
            + tm * tn * 4 + (2 << 20))
    return pl.pallas_call(
        _matmul_residual_kernel,
        out_shape=jax.ShapeDtypeStruct((M, N), out_dtype),
        grid_spec=pltpu.PrefetchScalarGridSpec(
            num_scalar_prefetch=0,
            grid=grid,
            in_specs=[pl.BlockSpec((tm, tk), lambda i, j, k: (i, k)),
                      pl.BlockSpec((tk, tn), lambda i, j, k: (k, j)),
                      pl.BlockSpec((tm, tn), lambda i, j, k: (i, j))],
            out_specs=pl.BlockSpec((tm, tn), lambda i, j, k: (i, j)),
            scratch_shapes=[pltpu.VMEM((tm, tn), jnp.float32)]),
        compiler_params=_compiler_params(
            ("parallel", "parallel", "arbitrary"), vmem),
        cost_estimate=cost,
    )(a, b, res)


# ----- fused RMSNorm + SwiGLU MLP + residual (xn cached, fused gate|up) -------
def _rms_mlp_kernel(x_ref, ln_ref, wgu_ref, wd_ref, o_ref, xn_ref, acc_ref,
                    *, eps, ti):
    j = pl.program_id(1)

    @pl.when(j == 0)
    def _():
        x = x_ref[...].astype(jnp.float32)
        ms = jnp.mean(x * x, axis=-1, keepdims=True)
        xn_ref[...] = (x * lax.rsqrt(ms + eps) * ln_ref[...]).astype(jnp.bfloat16)
        acc_ref[...] = jnp.zeros_like(acc_ref)

    gu = jnp.dot(xn_ref[...], wgu_ref[...].astype(jnp.bfloat16),
                 preferred_element_type=jnp.float32)          # (tm, 2*ti)
    gate = gu[:, :ti]
    up = gu[:, ti:]
    h = (gate * jax.nn.sigmoid(gate) * up).astype(jnp.bfloat16)   # SiLU(g)*u
    acc_ref[...] += jnp.dot(h, wd_ref[...].astype(jnp.bfloat16),
                            preferred_element_type=jnp.float32)

    @pl.when(j == pl.num_programs(1) - 1)
    def _():
        # fused residual: out = x + MLP(RMSNorm(x))
        o_ref[...] = (acc_ref[...]
                      + x_ref[...].astype(jnp.float32)).astype(o_ref.dtype)


def pallas_rms_mlp(x, ln_w, wgu, wd, eps, out_dtype=jnp.bfloat16):
    M, D = x.shape
    I = wgu.shape[1] // 2
    ti = _mlp_inter_tile(I)
    tm = _pick_tile(M, _TM_PREF, (8,))
    grid = (M // tm, I // ti)
    ln2d = ln_w.reshape(1, D).astype(jnp.float32)
    out_isz = jnp.dtype(out_dtype).itemsize
    cost = pl.CostEstimate(
        flops=6 * M * I * D + 8 * M * I + 4 * M * D,
        transcendentals=M * I + M,
        bytes_accessed=(x.size * x.dtype.itemsize
                        + (wgu.size + wd.size) * wgu.dtype.itemsize
                        + M * D * out_isz))
    vmem = (2 * (tm * D * x.dtype.itemsize + D * 2 * ti * wgu.dtype.itemsize
                 + ti * D * wd.dtype.itemsize + tm * D * out_isz)
            + tm * D * 4 + tm * D * 2 + (2 << 20))
    return pl.pallas_call(
        functools.partial(_rms_mlp_kernel, eps=eps, ti=ti),
        out_shape=jax.ShapeDtypeStruct((M, D), out_dtype),
        grid_spec=pltpu.PrefetchScalarGridSpec(
            num_scalar_prefetch=0,
            grid=grid,
            in_specs=[pl.BlockSpec((tm, D), lambda i, j: (i, 0)),
                      pl.BlockSpec((1, D), lambda i, j: (0, 0)),
                      pl.BlockSpec((D, 2 * ti), lambda i, j: (0, j)),
                      pl.BlockSpec((ti, D), lambda i, j: (j, 0))],
            out_specs=pl.BlockSpec((tm, D), lambda i, j: (i, 0)),
            scratch_shapes=[pltpu.VMEM((tm, D), jnp.bfloat16),
                            pltpu.VMEM((tm, D), jnp.float32)]),
        compiler_params=_compiler_params(("parallel", "arbitrary"), vmem),
        cost_estimate=cost,
    )(x, ln2d, wgu, wd)


# --------- flash attention: GQA group per grid step, causal DMA clamp ---------
def _flash_attn_kernel(q_ref, k_ref, v_ref, o_ref, m_ref, l_ref, acc_ref,
                       *, scale, rep, tq, tk, hd):
    qi = pl.program_id(2)
    ki = pl.program_id(3)

    @pl.when(ki == 0)
    def _():
        m_ref[...] = jnp.full_like(m_ref, -jnp.inf)
        l_ref[...] = jnp.zeros_like(l_ref)
        acc_ref[...] = jnp.zeros_like(acc_ref)

    # Compute only for kv tiles that intersect the causal triangle.
    @pl.when(ki * tk < (qi + 1) * tq)
    def _():
        # fold the `rep` q heads of this KV group into the MXU M dimension
        q = q_ref[0].reshape(rep * tq, hd)                 # (rep*tq, hd) bf16
        k = k_ref[0, 0]                                    # (tk, hd) bf16
        s = lax.dot_general(q, k, (((1,), (1,)), ((), ())),
                            preferred_element_type=jnp.float32) * scale

        t_in_tile = lax.broadcasted_iota(jnp.int32, (rep * tq, tk), 0) % tq
        row = qi * tq + t_in_tile
        col = ki * tk + lax.broadcasted_iota(jnp.int32, (rep * tq, tk), 1)
        s = jnp.where(col <= row, s, -jnp.inf)

        m_prev = m_ref[...]
        m_new = jnp.maximum(m_prev, jnp.max(s, axis=-1, keepdims=True))
        alpha = jnp.exp(m_prev - m_new)
        p = jnp.exp(s - m_new)
        l_ref[...] = alpha * l_ref[...] + jnp.sum(p, axis=-1, keepdims=True)
        acc_ref[...] = alpha * acc_ref[...] + jnp.dot(
            p.astype(jnp.bfloat16), v_ref[0, 0],
            preferred_element_type=jnp.float32)
        m_ref[...] = m_new

    @pl.when(ki == pl.num_programs(3) - 1)
    def _():
        inv_l = pl.reciprocal(l_ref[...], approx=True)
        o_ref[0] = (acc_ref[...] * inv_l).astype(o_ref.dtype).reshape(rep, tq, hd)


def pallas_flash_attention(q, k, v, scale, out_dtype=jnp.bfloat16):
    """q: (B, H, T, hd)  k/v: (B, Hkv, T, hd)  (all bf16) -> (B, H, T, hd)."""
    B, H, T, hd = q.shape
    Hkv = k.shape[1]
    rep = H // Hkv
    tq = _pick_tile(T, _TQ_PREF, (16, 8))
    tk = _pick_tile(T, _TKV_PREF, (16, 8))
    nq, nk = T // tq, T // tk
    grid = (B, Hkv, nq, nk)

    def q_map(b, g, qi, ki):
        return (b, g, qi, 0)

    def kv_map(b, g, qi, ki):
        # Clamp to the last causally-relevant kv tile: fully-masked grid steps
        # re-reference the already-resident block -> no extra DMA.
        last = ((qi + 1) * tq - 1) // tk
        return (b, g, jnp.minimum(ki, last), 0)

    isz = q.dtype.itemsize
    cost = pl.CostEstimate(
        flops=2 * B * H * T * T * hd,
        transcendentals=B * H * T * T // 2,
        bytes_accessed=((q.size + k.size + v.size) * isz
                        + q.size * jnp.dtype(out_dtype).itemsize))
    # TODO(synk): pack >=128/hd heads into the lane dim of the output block to
    # get unmasked vst when head_dim < 128.
    return pl.pallas_call(
        functools.partial(_flash_attn_kernel, scale=scale, rep=rep,
                          tq=tq, tk=tk, hd=hd),
        out_shape=jax.ShapeDtypeStruct((B, H, T, hd), out_dtype),
        grid_spec=pltpu.PrefetchScalarGridSpec(
            num_scalar_prefetch=0,
            grid=grid,
            in_specs=[pl.BlockSpec((1, rep, tq, hd), q_map),
                      pl.BlockSpec((1, 1, tk, hd), kv_map),
                      pl.BlockSpec((1, 1, tk, hd), kv_map)],
            out_specs=pl.BlockSpec((1, rep, tq, hd), q_map),
            scratch_shapes=[pltpu.VMEM((rep * tq, 1), jnp.float32),
                            pltpu.VMEM((rep * tq, 1), jnp.float32),
                            pltpu.VMEM((rep * tq, hd), jnp.float32)]),
        compiler_params=_compiler_params(
            ("parallel", "parallel", "parallel", "arbitrary")),
        cost_estimate=cost,
    )(q, k, v)


# ----------------------------- JAX glue (RoPE etc.) --------------------------
def rope_cos_sin(T, dim, theta):
    inv_freq = 1.0 / (theta ** (jnp.arange(0, dim, 2, dtype=jnp.float32) / dim))
    t = jnp.arange(T, dtype=jnp.float32)
    freqs = jnp.einsum("i,j->ij", t, inv_freq)              # (T, dim/2)
    emb = jnp.concatenate((freqs, freqs), axis=-1).reshape(1, T, 1, dim)
    return jnp.cos(emb), jnp.sin(emb)


def rotate_half(x):
    h = x.shape[-1] // 2
    return jnp.concatenate((-x[..., h:], x[..., :h]), axis=-1)


# ----------------------------- model blocks ----------------------------------
def block_forward(p, x, cfg: GPTConfig):
    B, T, D = x.shape
    H, Hkv = cfg.n_head, cfg.n_kv_heads
    hd = D // H
    kvdim = Hkv * hd
    xf = x.reshape(B * T, D)                                 # bf16

    # fused RMSNorm + [Wq|Wk|Wv] projection (single kernel launch, bf16 out)
    qkv = pallas_rms_matmul(xf, p["ln1_w"], p["wqkv"], cfg.rms_norm_eps,
                            out_dtype=jnp.bfloat16)
    q = qkv[:, :D].reshape(B, T, H, hd)
    k = qkv[:, D:D + kvdim].reshape(B, T, Hkv, hd)
    v = qkv[:, D + kvdim:].reshape(B, T, Hkv, hd)

    # RoPE (glue: tiny elementwise, f32 math, bf16 result)
    cos_e, sin_e = rope_cos_sin(T, hd, cfg.rope_theta)
    qf, kf = q.astype(jnp.float32), k.astype(jnp.float32)
    q = (qf * cos_e + rotate_half(qf) * sin_e).astype(jnp.bfloat16)
    k = (kf * cos_e + rotate_half(kf) * sin_e).astype(jnp.bfloat16)

    # head-major layout for the attention kernel; GQA grouping + causal DMA
    # clamp are handled inside via BlockSpec index_maps.
    # TODO(synk): emit q/k/v head-major directly from the QKV kernel epilogue
    # to drop these transposes (blocked today by the (8,128) BlockSpec rule on
    # a rep-sized head-axis block in (B,T,H,hd) layout).
    q = q.transpose(0, 2, 1, 3)              # (B, H,   T, hd)
    k = k.transpose(0, 2, 1, 3)              # (B, Hkv, T, hd)
    v = v.transpose(0, 2, 1, 3)

    attn = pallas_flash_attention(q, k, v, 1.0 / math.sqrt(hd))
    attn = attn.transpose(0, 2, 1, 3).reshape(B * T, D)      # bf16

    # o_proj with the residual add fused into the epilogue
    h = pallas_matmul_residual(attn, p["wo"], xf, out_dtype=jnp.bfloat16)
    # RMSNorm + SwiGLU MLP with the residual add fused into the epilogue
    out = pallas_rms_mlp(h, p["ln2_w"], p["wgu"], p["wd"], cfg.rms_norm_eps,
                         out_dtype=jnp.bfloat16)
    return out.reshape(B, T, D)


def gpt_forward(params, idx, cfg: GPTConfig, targets=None):
    B, T = idx.shape
    D, V = cfg.n_embd, cfg.vocab_size
    x = params["embed"][idx].astype(jnp.bfloat16)            # embedding gather
    for layer in params["layers"]:
        x = block_forward(layer, x, cfg)
    # fused final RMSNorm + lm_head (logits kept in f32 for the loss)
    logits = pallas_rms_matmul(x.reshape(B * T, D), params["norm_w"],
                               params["lm_head"], cfg.rms_norm_eps,
                               out_dtype=jnp.float32)
    logits = logits.reshape(B, T, V)
    loss = None
    if targets is not None:   # plain-JAX cross entropy (matches F.cross_entropy)
        logp = jax.nn.log_softmax(logits.reshape(-1, V), axis=-1)
        nll = -jnp.take_along_axis(logp, targets.reshape(-1, 1), axis=1)[:, 0]
        loss = jnp.mean(nll)
    return logits, loss


# ----------------------------- params ---------------------------------------
def init_params(cfg: GPTConfig, key):
    assert cfg.hidden_act == "silu"

    def nrm(k, shape, dtype):
        return (0.02 * jax.random.normal(k, shape, jnp.float32)).astype(dtype)

    D, I, V = cfg.n_embd, cfg.intermediate_size, cfg.vocab_size
    hd = D // cfg.n_head
    kvdim = cfg.n_kv_heads * hd
    ti = _mlp_inter_tile(I)

    keys = jax.random.split(key, 2 + cfg.n_layer)
    params = {
        "embed": nrm(keys[0], (V, D), jnp.float32),
        "norm_w": jnp.ones((D,), jnp.float32),
        "lm_head": nrm(keys[1], (D, V), jnp.bfloat16),       # MXU weights bf16
        "layers": [],
    }
    for li in range(cfg.n_layer):
        lk = jax.random.split(keys[2 + li], 7)
        wq = nrm(lk[0], (D, D), jnp.bfloat16)
        wk = nrm(lk[1], (D, kvdim), jnp.bfloat16)
        wv = nrm(lk[2], (D, kvdim), jnp.bfloat16)
        wg = nrm(lk[4], (D, I), jnp.bfloat16)
        wu = nrm(lk[5], (D, I), jnp.bfloat16)
        # interleave gate/up per intermediate tile so the MLP kernel can do a
        # single (tm, D) x (D, 2*ti) dot per grid step.
        wgu = jnp.concatenate(
            [wg.reshape(D, I // ti, ti), wu.reshape(D, I // ti, ti)],
            axis=2).reshape(D, 2 * I)
        params["layers"].append({
            "ln1_w": jnp.ones((D,), jnp.float32),
            "ln2_w": jnp.ones((D,), jnp.float32),
            "wqkv": jnp.concatenate([wq, wk, wv], axis=1),   # fused QKV weight
            "wo": nrm(lk[3], (D, D), jnp.bfloat16),
            "wgu": wgu,
            "wd": nrm(lk[6], (I, D), jnp.bfloat16),
        })
    return params


# ----------------------------- main ------------------------------------------
if __name__ == "__main__":
    cfg = GPTConfig(block_size=64, vocab_size=256, n_layer=2, n_head=4,
                    n_embd=64, intermediate_size=128, n_kv_heads=2,
                    hidden_act="silu", rms_norm_eps=1e-5, rope_theta=10000.0)

    root = jax.random.PRNGKey(0)
    pkey, ikey = jax.random.split(root)
    params = init_params(cfg, pkey)

    B, T = 2, 16
    idx = jax.random.randint(ikey, (B, T), 0, cfg.vocab_size, dtype=jnp.int32)

    logits, loss = gpt_forward(params, idx, cfg)
    logits = jax.block_until_ready(logits)
    assert logits.shape == (B, T, cfg.vocab_size)
    assert loss is None
    assert bool(jnp.all(jnp.isfinite(logits)))
    print("KERNEL_OK")
</pallas_src>

<mosaic_0001>
module attributes {stable_mosaic.version = 11 : i64} {
  func.func @_rms_matmul_kernel(%arg0: i32, %arg1: i32, %arg2: memref<32x64xbf16, #tpu.memory_space<vmem>>, %arg3: memref<1x64xf32, #tpu.memory_space<vmem>>, %arg4: memref<64x128xbf16, #tpu.memory_space<vmem>>, %arg5: memref<32x128xbf16, #tpu.memory_space<vmem>>, %arg6: memref<32x64xbf16, #tpu.memory_space<vmem>>) attributes {dimension_semantics = [#tpu.dimension_semantics<parallel>, #tpu.dimension_semantics<arbitrary>], iteration_bounds = array<i64: 1, 1>, scalar_prefetch = 0 : i64, scratch_operands = 1 : i64, tpu.core_type = #tpu.core_type<tc>, window_params = [{transform_indices = @transform_0, window_bounds = array<i64: 32, 64>}, {pipeline_mode = #tpu.pipeline_mode<synchronous>, transform_indices = @transform_1, window_bounds = array<i64: 1, 64>}, {transform_indices = @transform_2, window_bounds = array<i64: 64, 128>}, {transform_indices = @transform_3, window_bounds = array<i64: 32, 128>}]} {
    %c0_i32 = arith.constant 0 : i32
    %0 = arith.cmpi eq, %arg1, %c0_i32 : i32
    %1 = arith.extui %0 : i1 to i32
    %c0_i32_0 = arith.constant 0 : i32
    %2 = arith.cmpi ne, %1, %c0_i32_0 : i32
    scf.if %2 {
      %c0_6 = arith.constant 0 : index
      %c0_7 = arith.constant 0 : index
      %8 = vector.load %arg2[%c0_6, %c0_7] : memref<32x64xbf16, #tpu.memory_space<vmem>>, vector<32x64xbf16>
      %9 = arith.extf %8 : vector<32x64xbf16> to vector<32x64xf32>
      %10 = arith.mulf %9, %9 : vector<32x64xf32>
      %cst_8 = arith.constant dense<0.000000e+00> : vector<32xf32>
      %11 = vector.multi_reduction <add>, %10, %cst_8 [1] : vector<32x64xf32> to vector<32xf32>
      %12 = vector.shape_cast %11 : vector<32xf32> to vector<32x1xf32>
      %cst_9 = arith.constant 6.400000e+01 : f32
      %13 = vector.broadcast %cst_9 : f32 to vector<32x1xf32>
      %14 = arith.divf %12, %13 : vector<32x1xf32>
      %cst_10 = arith.constant 9.99999974E-6 : f32
      %15 = vector.broadcast %cst_10 : f32 to vector<32x1xf32>
      %16 = arith.addf %14, %15 : vector<32x1xf32>
      %17 = math.rsqrt %16 : vector<32x1xf32>
      %18 = vector.broadcast %17 : vector<32x1xf32> to vector<32x64xf32>
      %19 = arith.mulf %9, %18 : vector<32x64xf32>
      %c0_11 = arith.constant 0 : index
      %c0_12 = arith.constant 0 : index
      %20 = vector.load %arg3[%c0_11, %c0_12] : memref<1x64xf32, #tpu.memory_space<vmem>>, vector<1x64xf32>
      %21 = vector.broadcast %20 : vector<1x64xf32> to vector<32x64xf32>
      %22 = arith.mulf %19, %21 : vector<32x64xf32>
      %23 = arith.truncf %22 : vector<32x64xf32> to vector<32x64xbf16>
      %c0_13 = arith.constant 0 : index
      %c0_14 = arith.constant 0 : index
      %24 = vector.load %arg6[%c0_13, %c0_14] : memref<32x64xbf16, #tpu.memory_space<vmem>>, vector<32x64xbf16>
      tpu.vector_store %arg6[%c0_13, %c0_14], %23 {strides = array<i32>} : memref<32x64xbf16, #tpu.memory_space<vmem>>, vector<32x64xbf16>,
    } else {
    }
    %c0 = arith.constant 0 : index
    %c0_1 = arith.constant 0 : index
    %3 = vector.load %arg6[%c0, %c0_1] : memref<32x64xbf16, #tpu.memory_space<vmem>>, vector<32x64xbf16>
    %c0_2 = arith.constant 0 : index
    %c0_3 = arith.constant 0 : index
    %4 = vector.load %arg4[%c0_2, %c0_3] : memref<64x128xbf16, #tpu.memory_space<vmem>>, vector<64x128xbf16>
    %cst = arith.constant dense<0.000000e+00> : vector<32x128xf32>
    %5 = tpu.matmul %3, %4, %cst {dimension_numbers = #tpu.dot_dimension_numbers<[1], [0], [0], [1], [0, 0, 1, 1], [], []>} : vector<32x64xbf16>, vector<64x128xbf16>, vector<32x128xf32> -> vector<32x128xf32>
    %6 = arith.truncf %5 : vector<32x128xf32> to vector<32x128xbf16>
    %c0_4 = arith.constant 0 : index
    %c0_5 = arith.constant 0 : index
    %7 = vector.load %arg5[%c0_4, %c0_5] : memref<32x128xbf16, #tpu.memory_space<vmem>>, vector<32x128xbf16>
    tpu.vector_store %arg5[%c0_4, %c0_5], %6 {strides = array<i32>} : memref<32x128xbf16, #tpu.memory_space<vmem>>, vector<32x128xbf16>,
    return
  }
  func.func @transform_0(%arg0: i32, %arg1: i32) -> (i32, i32) {
    %c0_i32 = arith.constant 0 : i32
    %c0_i32_0 = arith.constant 0 : i32
    return %arg0, %c0_i32 : i32, i32
  }
  func.func @transform_1(%arg0: i32, %arg1: i32) -> (i32, i32) {
    %c0_i32 = arith.constant 0 : i32
    %c0_i32_0 = arith.constant 0 : i32
    %c0_i32_1 = arith.constant 0 : i32
    return %c0_i32, %c0_i32_0 : i32, i32
  }
  func.func @transform_2(%arg0: i32, %arg1: i32) -> (i32, i32) {
    %c0_i32 = arith.constant 0 : i32
    %c0_i32_0 = arith.constant 0 : i32
    return %c0_i32, %arg1 : i32, i32
  }
  func.func @transform_3(%arg0: i32, %arg1: i32) -> (i32, i32) {
    %c0_i32 = arith.constant 0 : i32
    return %arg0, %arg1 : i32, i32
  }
}

</mosaic_0001>

<llo_original>
// kernel: tpu_custom_call.1
$region0: #{tpu_custom_call.1}
  #allocation0 [shape = 'u32[]', space=smem, size = 0x4, offset = 0x4, fixed_abs, tag = 'smem constant byte address 0x4 - core index']
  #allocation1 [shape = 'u32[144,128]{1,0:T(1,128)}', space=vmem, size = 0x12000, scoped, tag = 'internal scratch']
  #allocation2 [shape = 'bf16[32,64]{1,0:T(16,128)(2,1)}', space=vmem, size = 0x2000, scoped, tag = 'scratch operand']
  %s0 = inlined_call_operand.hbm [shape: bf16[32,64], index: 0, kind: input, shape index: {}]
  %s1 = inlined_call_operand.vmem [shape: f32[1,64], index: 1, kind: input, shape index: {}]
  %s2 = inlined_call_operand.hbm [shape: bf16[64,128], index: 2, kind: input, shape index: {}]
  %s3 = inlined_call_operand.hbm [shape: bf16[32,128], index: 3, kind: output, shape index: {}]
  %s4 = sld [smem:[#allocation0]]
  $region34: #{tpu_custom_call.1} parent=0
    _
  %s6 = ssub.s32 1, %s4
  %s7 = scalar_select 0, %s6, %s4
  $region1: #{tpu_custom_call.1} parent=0
    #allocation3 [shape = 'u8[8192]{0}', space=vmem, size = 0x2000, scoped, tag = 'input window, operand 0, single buffered']
    #allocation4 [shape = 's32[1]{0}', space=sflag, size = 0x4, scoped, tag = 'scoped memory for tpu_custom_call.1']
    #allocation5 [shape = 's32[1]{0}', space=sflag, size = 0x4, scoped, tag = 'scoped memory for tpu_custom_call.1']
    #allocation6 [shape = 'u8[16384]{0}', space=vmem, size = 0x4000, scoped, tag = 'input window, operand 2, single buffered']
    #allocation7 [shape = 's32[1]{0}', space=sflag, size = 0x4, scoped, tag = 'scoped memory for tpu_custom_call.1']
    #allocation8 [shape = 'u8[8192]{0}', space=vmem, size = 0x2000, scoped, tag = 'output window, operand 0, single buffered']
    %8 = vsyncpa [#allocation4], 0
    %9 = vsyncpa [#allocation7], 0
    %10 = vsyncpa [#allocation5], 0
    // Predicated region
    $region2: #{tpu_custom_call.1} parent=1 // pred_check
      _
    $region3: #{tpu_custom_call.1} parent=1 // pred_check_branch
      %12 = sbr.rel (0) target = $region5
    $region4: #{tpu_custom_call.1} parent=1 // pred_region
      %s14 = ssub.s32 256, 256
      %15 = vsyncadd [#allocation4], %s14
      %s16 = sshll.u32 [#allocation3], 4
      %s17 = int_to_ptr.vmem [resolvable:$true] %s16
      %22 = dma.hbm_to_vmem [thread:$0]  %s0, 256, %s17, [#allocation4], 64, 64, 4
    $region5: #{tpu_custom_call.1} parent=1 // pred_fallthru
      _
    // Predicated region
    $region6: #{tpu_custom_call.1} parent=1 // pred_check
      _
    $region7: #{tpu_custom_call.1} parent=1 // pred_check_branch
      %24 = sbr.rel (0) target = $region9
    $region8: #{tpu_custom_call.1} parent=1 // pred_region
      _
    $region9: #{tpu_custom_call.1} parent=1 // pred_fallthru
      _
    // Predicated region
    $region10: #{tpu_custom_call.1} parent=1 // pred_check
      _
    $region11: #{tpu_custom_call.1} parent=1 // pred_check_branch
      %26 = sbr.rel (0) target = $region13
    $region12: #{tpu_custom_call.1} parent=1 // pred_region
      %s28 = ssub.s32 512, 512
      %29 = vsyncadd [#allocation7], %s28
      %s30 = sshll.u32 [#allocation6], 4
      %s31 = int_to_ptr.vmem [resolvable:$true] %s30
      %36 = dma.hbm_to_vmem [thread:$0]  %s2, 512, %s31, [#allocation7], 64, 64, 4
    $region13: #{tpu_custom_call.1} parent=1 // pred_fallthru
      _
    // Predicated region
    $region14: #{tpu_custom_call.1} parent=1 // pred_check
      _
    $region15: #{tpu_custom_call.1} parent=1 // pred_check_branch
      %38 = sbr.rel (0) target = $region17
    $region16: #{tpu_custom_call.1} parent=1 // pred_region
      %39 = dma.done [#allocation4], 256
    $region17: #{tpu_custom_call.1} parent=1 // pred_fallthru
      _
    // Predicated region
    $region18: #{tpu_custom_call.1} parent=1 // pred_check
      _
    $region19: #{tpu_custom_call.1} parent=1 // pred_check_branch
      %41 = sbr.rel (0) target = $region21
    $region20: #{tpu_custom_call.1} parent=1 // pred_region
      %42 = dma.done [#allocation7], 512
    $region21: #{tpu_custom_call.1} parent=1 // pred_fallthru
      _
    %p44 = scmp.eq.s32.totalorder 0, 0
    // Predicated region
    $region22: #{tpu_custom_call.1} parent=1 // pred_check
      %p45 = pneg %p44
    $region23: #{tpu_custom_call.1} parent=1 // pred_check_branch
      %47 = sbr.rel (%p45) target = $region25
    $region24: #{tpu_custom_call.1} parent=1 // pred_region
      %v48 = vld [vmem:[#allocation3] sm:$0xf]
      %v49 = vld [vmem:[#allocation3 + $0x4] sm:$0xf]
      %v50 = vld [vmem:[#allocation3 + $0x8] sm:$0xf]
      %v51 = vld [vmem:[#allocation3 + $0xc] sm:$0xf]
      %v52 = vunpack.c.l.bf16 %v48
      %v53 = vunpack.c.l.bf16 %v49
      %v54 = vunpack.c.l.bf16 %v50
      %v55 = vunpack.c.l.bf16 %v51
      %v56 = vmul.f32 %v52, %v52
      %v57 = vmul.f32 %v53, %v53
      %v58 = vmul.f32 %v54, %v54
      %v59 = vmul.f32 %v55, %v55
      %vm60 = vcmask 523264
      %v61 = vsel %vm60, %v56, 0.0
      %62 = vadd.xlane.f32.xlu0 %v61
      %v63 = vpop.xlane.xlu0 %62
      %v64 = vsel %vm60, %v57, 0.0
      %65 = vadd.xlane.f32.xlu0 %v64
      %v66 = vpop.xlane.xlu0 %65
      %v67 = vsel %vm60, %v58, 0.0
      %68 = vadd.xlane.f32.xlu0 %v67
      %v69 = vpop.xlane.xlu0 %68
      %v70 = vsel %vm60, %v59, 0.0
      %71 = vadd.xlane.f32.xlu0 %v70
      %v72 = vpop.xlane.xlu0 %71
      %v73 = vrcp.pop 64.0
      %v74 = vmul.f32 %v63, %v73
      %v75 = vmul.f32 %v66, %v73
      %v76 = vmul.f32 %v69, %v73
      %v77 = vmul.f32 %v72, %v73
      %v78 = vadd.f32 %v74, 1e-05
      %v79 = vadd.f32 %v75, 1e-05
      %v80 = vadd.f32 %v76, 1e-05
      %v81 = vadd.f32 %v77, 1e-05
      %v82 = vrsqrt.pop %v78
      %v83 = vrsqrt.pop %v79
      %v84 = vrsqrt.pop %v80
      %v85 = vrsqrt.pop %v81
      %v86 = vmul.f32 %v52, %v82
      %v87 = vmul.f32 %v53, %v83
      %v88 = vmul.f32 %v54, %v84
      %v89 = vmul.f32 %v55, %v85
      %v90 = vld [vmem:[%s1] sm:$0x1]
      %v92 = vlaneseq
      %v93 = vshrl.u32 %v92, 7
      %v94 = vsub.s32 0, %v93
      %v95 = vrot.slane %v90, %v94
      %v97 = vmul.f32 %v86, %v95
      %v98 = vmul.f32 %v87, %v95
      %v99 = vmul.f32 %v88, %v95
      %v100 = vmul.f32 %v89, %v95
      %v101 = vpack.c.bf16 %v98, %v97
      %v102 = vpack.c.bf16 %v100, %v99
      %103 = vst.msk [vmem:[#allocation2] sm:$0xff] %vm60, %v101
      %104 = vst.msk [vmem:[#allocation2 + $0x8] sm:$0xff] %vm60, %v102
    $region25: #{tpu_custom_call.1} parent=1 // pred_fallthru
      _
    %v105 = vld [vmem:[#allocation2] sm:$0xff]
    %v106 = vld [vmem:[#allocation2 + $0x8] sm:$0xff]
    %v107 = vld [vmem:[#allocation6] sm:$0xf]
    %v108 = vld [vmem:[#allocation6 + $0x4] sm:$0xf]
    %v109 = vld [vmem:[#allocation6 + $0x8] sm:$0xf]
    %v110 = vld [vmem:[#allocation6 + $0xc] sm:$0xf]
    %v111 = vld [vmem:[#allocation6 + $0x10] sm:$0xf]
    %v112 = vld [vmem:[#allocation6 + $0x14] sm:$0xf]
    %v113 = vld [vmem:[#allocation6 + $0x18] sm:$0xf]
    %v114 = vld [vmem:[#allocation6 + $0x1c] sm:$0xf]
    %v123 = vunpack.c.l.b16 %v107
    %v124 = vunpack.c.l.b16 %v108
    %v125 = vunpack.c.l.b16 %v109
    %v126 = vunpack.c.l.b16 %v110
    %v127 = vunpack.c.l.b16 %v111
    %v128 = vunpack.c.l.b16 %v112
    %v129 = vunpack.c.l.b16 %v113
    %v130 = vunpack.c.l.b16 %v114
    %v131 = vpack.c.b16 %v124, %v123
    %v132 = vpack.c.b16 %v126, %v125
    %v133 = vpack.c.b16 %v128, %v127
    %v134 = vpack.c.b16 %v130, %v129
    %vm139 = vcmask 523264
    %v141 = vsel %vm139, %v105, 0
    %v144 = vsel %vm139, %v106, 0
    %146 = vmatprep.subr.bf16.mxu0 0
    %147 = vmatpush1.bf16.msra.mxu0 %v131
    %148 = vmatprep.subr.bf16.mxu0 0
    %149 = vmatpush1.bf16.msra.mxu0 %v132
    %150 = vmatprep.subr.bf16.mxu0 0
    %151 = vmatpush1.bf16.msra.mxu0 %v133
    %152 = vmatprep.subr.bf16.mxu0 0
    %153 = vmatpush1.bf16.msra.mxu0 %v134
    %154 = vmatprep.subr.bf16.mxu0 0
    %155 = vmatpush1.bf16.msra.mxu0 0
    %156 = vmatprep.subr.bf16.mxu0 0
    %157 = vmatpush1.bf16.msra.mxu0 0
    %158 = vmatprep.subr.bf16.mxu0 0
    %159 = vmatpush1.bf16.msra.mxu0 0
    %160 = vmatprep.subr.bf16.mxu0 0
    %161 = vmatpush1.bf16.msra.mxu0 0
    %162 = vmatprep.subr.bf16.mxu0 0
    %163 = vmatpush1.bf16.msra.mxu0 0
    %164 = vmatprep.subr.bf16.mxu0 0
    %165 = vmatpush1.bf16.msra.mxu0 0
    %166 = vmatprep.subr.bf16.mxu0 0
    %167 = vmatpush1.bf16.msra.mxu0 0
    %168 = vmatprep.subr.bf16.mxu0 0
    %169 = vmatpush1.bf16.msra.mxu0 0
    %170 = vmatprep.subr.bf16.mxu0 0
    %171 = vmatpush1.bf16.msra.mxu0 0
    %172 = vmatprep.subr.bf16.mxu0 0
    %173 = vmatpush1.bf16.msra.mxu0 0
    %174 = vmatprep.subr.bf16.mxu0 0
    %175 = vmatpush1.bf16.msra.mxu0 0
    %176 = vmatprep.subr.bf16.mxu0 0
    %177 = vmatpush1.bf16.msra.mxu0 0
    %178 = vmatprep.mubr.bf16.mxu0 0
    %179 = vmatmul.mubr.bf16.gmra.mrb[0].mxu0 %v141
    %v180 = vpop.f32.mrb[0].mxu0
    %v181 = vadd.f32 0.0, %v180
    %v182 = vpop.f32.mrb[0].mxu0
    %v183 = vpop.f32.mrb[0].mxu0
    %v184 = vadd.f32 0.0, %v183
    %v185 = vpop.f32.mrb[0].mxu0
    %186 = vmatprep.mubr.bf16.mxu0 0
    %187 = vmatmul.mubr.bf16.gmra.mrb[0].mxu0 %v144
    %v188 = vpop.f32.mrb[0].mxu0
    %v189 = vadd.f32 0.0, %v188
    %v190 = vpop.f32.mrb[0].mxu0
    %v191 = vpop.f32.mrb[0].mxu0
    %v192 = vadd.f32 0.0, %v191
    %v193 = vpop.f32.mrb[0].mxu0
    %194 = vdwg.mxu0
    %v195 = vpack.c.bf16 %v184, %v181
    %v196 = vpack.c.bf16 %v192, %v189
    %v199 = vunpack.c.l.b16 %v195
    %v200 = vunpack.c.h.b16 %v195
    %v201 = vunpack.c.l.b16 %v196
    %v202 = vunpack.c.h.b16 %v196
    %v203 = vpack.c.b16 %v199, %v199
    %v204 = vpack.c.b16 %v200, %v200
    %v205 = vpack.c.b16 %v201, %v201
    %v206 = vpack.c.b16 %v202, %v202
    %211 = vst [vmem:[#allocation8] sm:$0xf] %v203
    %212 = vst [vmem:[#allocation8 + $0x4] sm:$0xf] %v204
    %213 = vst [vmem:[#allocation8 + $0x8] sm:$0xf] %v205
    %214 = vst [vmem:[#allocation8 + $0xc] sm:$0xf] %v206
    // Predicated region
    $region26: #{tpu_custom_call.1} parent=1 // pred_check
      _
    $region27: #{tpu_custom_call.1} parent=1 // pred_check_branch
      %216 = sbr.rel (0) target = $region29
    $region28: #{tpu_custom_call.1} parent=1 // pred_region
      %s218 = ssub.s32 256, 256
      %219 = vsyncadd [#allocation5], %s218
      %s220 = sshll.u32 [#allocation8], 4
      %s221 = int_to_ptr.vmem [resolvable:$true] %s220
      %226 = dma.vmem_to_hbm [thread:$0]  %s221, 256, %s3, [#allocation5], 64, 64, 4
    $region29: #{tpu_custom_call.1} parent=1 // pred_fallthru
      _
    // Predicated region
    $region30: #{tpu_custom_call.1} parent=1 // pred_check
      _
    $region31: #{tpu_custom_call.1} parent=1 // pred_check_branch
      %228 = sbr.rel (0) target = $region33
    $region32: #{tpu_custom_call.1} parent=1 // pred_region
      %229 = dma.done [#allocation5], 256
    $region33: #{tpu_custom_call.1} parent=1 // pred_fallthru
      _
    %230 = vsyncpa [#allocation4], 1
    %231 = vsyncpa [#allocation7], 1
    %232 = vsyncpa [#allocation5], 1

</llo_original>
